<compile_context>
chip_gen: v5e
topology: v5e:2x2
jax: 0.10.0
libtpu: 0.0.40
codegen_flags: <defaults>
</compile_context>

<pallas_src>
import functools

import jax
import jax.numpy as jnp
from jax.experimental import pallas as pl
from jax.experimental.pallas import tpu as pltpu


def _round_up(x, m):
    return (x + m - 1) // m * m


def _emb_kernel(dist_ref, o_ref, *, coeff, start, step, num_gaussians):
    # dist_ref: (TN, 1)  tile of flattened distances (sublane-major column)
    # o_ref:    (TN, G)  output tile
    lane = jax.lax.broadcasted_iota(jnp.int32, (1, num_gaussians), 1)
    offset = start + step * lane.astype(jnp.float32)        # (1, G) constant row
    diff = dist_ref[...] - offset                            # broadcast -> (TN, G)
    o_ref[...] = jnp.exp((diff * diff) * coeff).astype(o_ref.dtype)


def gaussian_smearing(dist, *, start=0.0, stop=5.0, num_gaussians=50,
                      row_tile=4096, out_dtype=jnp.float32):
    """Pallas implementation of emb.forward.

    dist: any-shaped float array (flattened like torch .view(-1, 1)).
    Returns (N, num_gaussians) with N = dist.size.
    out_dtype=jnp.bfloat16 halves HBM writeback when the consumer tolerates it;
    the default float32 matches the PyTorch module exactly.
    """
    if num_gaussians < 2:
        raise ValueError("num_gaussians must be >= 2")
    step = (float(stop) - float(start)) / (num_gaussians - 1)
    coeff = -0.5 / step ** 2

    dist_flat = jnp.reshape(dist, (-1, 1)).astype(jnp.float32)   # (N, 1)
    n = dist_flat.shape[0]
    g = int(num_gaussians)

    # --- Row-tile selection -------------------------------------------------
    # Multiple of 8 (sublane constraint), never larger than the rounded row
    # count.  Ensure the "parallel" grid axis has >=2 (>=4 for large N) blocks
    # so v7x's two TensorCores both get work, without shrinking tiles so far
    # that the ~0.35us/step grid overhead stops being amortized.
    t = min(int(row_tile), _round_up(n, 8))
    if n >= 4 * 1024:
        min_blocks = 4
    elif n >= 2 * 1024:
        min_blocks = 2
    else:
        min_blocks = 1
    if min_blocks > 1:
        t = min(t, _round_up(pl.cdiv(n, min_blocks), 8))
    t = max(8, _round_up(t, 8))

    # --- Scoped VMEM budget ---------------------------------------------------
    # Double-buffered input tile is lane-padded 1 -> 128 (512 B/row/buffer) and
    # the output tile pads its G lanes up to 128.  Budget with headroom; stay
    # well under the smallest physical VMEM (64 MiB on v7x).
    out_itemsize = jnp.dtype(out_dtype).itemsize
    bytes_per_row = 2 * (128 * 4) + 2 * (_round_up(g, 128) * out_itemsize)
    vmem_limit = int(min(max(t * bytes_per_row + (4 << 20), 16 << 20), 48 << 20))

    kernel = functools.partial(
        _emb_kernel,
        coeff=float(coeff),
        start=float(start),
        step=float(step),
        num_gaussians=g,
    )

    return pl.pallas_call(
        kernel,
        out_shape=jax.ShapeDtypeStruct((n, g), out_dtype),
        grid_spec=pltpu.PrefetchScalarGridSpec(
            num_scalar_prefetch=0,
            grid=(pl.cdiv(n, t),),
            in_specs=[pl.BlockSpec((t, 1), lambda i: (i, 0))],
            out_specs=pl.BlockSpec((t, g), lambda i: (i, 0)),
        ),
        compiler_params=pltpu.CompilerParams(
            dimension_semantics=("parallel",),
            vmem_limit_bytes=vmem_limit,
        ),
    )(dist_flat)


if __name__ == "__main__":
    key = jax.random.PRNGKey(0)
    k1, k2 = jax.random.split(key)

    start, stop, num_gaussians = 0.0, 5.0, 50
    offset = jnp.linspace(start, stop, num_gaussians, dtype=jnp.float32)
    coeff = -0.5 / float(offset[1] - offset[0]) ** 2

    def ref_fn(d):
        return jnp.exp(coeff * (jnp.reshape(d, (-1, 1)) - offset[None, :]) ** 2)

    # Case 1: small (8, 16) block of pairwise distances (module flattens any shape).
    dist_a = jax.random.uniform(k1, (8, 16), dtype=jnp.float32,
                                minval=0.0, maxval=5.0)
    out_a = jax.block_until_ready(
        gaussian_smearing(dist_a, start=start, stop=stop,
                          num_gaussians=num_gaussians))
    ref_a = ref_fn(dist_a)
    assert out_a.shape == (dist_a.size, num_gaussians)
    assert bool(jnp.all(jnp.isfinite(out_a)))
    assert float(jnp.max(jnp.abs(out_a - ref_a))) < 1e-4

    # Case 2: ragged row count (2100 rows -> 2 grid blocks of 1056 rows) to
    # exercise the masked last block and the multi-block "parallel" axis.
    dist_b = jax.random.uniform(k2, (2100,), dtype=jnp.float32,
                                minval=0.0, maxval=5.0)
    out_b = jax.block_until_ready(
        gaussian_smearing(dist_b, start=start, stop=stop,
                          num_gaussians=num_gaussians))
    ref_b = ref_fn(dist_b)
    assert out_b.shape == (2100, num_gaussians)
    assert bool(jnp.all(jnp.isfinite(out_b)))
    assert float(jnp.max(jnp.abs(out_b - ref_b))) < 1e-4

    print("KERNEL_OK")
</pallas_src>

<mosaic_0001>
module attributes {stable_mosaic.version = 11 : i64} {
  func.func @_emb_kernel(%arg0: i32, %arg1: memref<128x1xf32, #tpu.memory_space<vmem>>, %arg2: memref<128x50xf32, #tpu.memory_space<vmem>>) attributes {dimension_semantics = [#tpu.dimension_semantics<parallel>], iteration_bounds = array<i64: 1>, scalar_prefetch = 0 : i64, scratch_operands = 0 : i64, tpu.core_type = #tpu.core_type<tc>, window_params = [{transform_indices = @transform_0, window_bounds = array<i64: 128, 1>}, {transform_indices = @transform_1, window_bounds = array<i64: 128, 50>}]} {
    %0 = tpu.iota {dimensions = array<i32: 1>} : vector<1x50xi32>
    %1 = arith.sitofp %0 : vector<1x50xi32> to vector<1x50xf32>
    %cst = arith.constant 0.10204082 : f32
    %2 = vector.broadcast %cst : f32 to vector<1x50xf32>
    %3 = arith.mulf %2, %1 : vector<1x50xf32>
    %cst_0 = arith.constant 0.000000e+00 : f32
    %4 = vector.broadcast %cst_0 : f32 to vector<1x50xf32>
    %5 = arith.addf %4, %3 : vector<1x50xf32>
    %c0 = arith.constant 0 : index
    %c0_1 = arith.constant 0 : index
    %6 = vector.load %arg1[%c0, %c0_1] : memref<128x1xf32, #tpu.memory_space<vmem>>, vector<128x1xf32>
    %7 = vector.broadcast %6 : vector<128x1xf32> to vector<128x50xf32>
    %8 = vector.broadcast %5 : vector<1x50xf32> to vector<128x50xf32>
    %9 = arith.subf %7, %8 : vector<128x50xf32>
    %10 = arith.mulf %9, %9 : vector<128x50xf32>
    %cst_2 = arith.constant -4.802000e+01 : f32
    %11 = vector.broadcast %cst_2 : f32 to vector<128x50xf32>
    %12 = arith.mulf %10, %11 : vector<128x50xf32>
    %13 = math.exp %12 : vector<128x50xf32>
    %c0_3 = arith.constant 0 : index
    %c0_4 = arith.constant 0 : index
    %14 = vector.load %arg2[%c0_3, %c0_4] : memref<128x50xf32, #tpu.memory_space<vmem>>, vector<128x50xf32>
    tpu.vector_store %arg2[%c0_3, %c0_4], %13 {strides = array<i32>} : memref<128x50xf32, #tpu.memory_space<vmem>>, vector<128x50xf32>,
    return
  }
  func.func @transform_0(%arg0: i32) -> (i32, i32) {
    %c0_i32 = arith.constant 0 : i32
    %c0_i32_0 = arith.constant 0 : i32
    return %arg0, %c0_i32 : i32, i32
  }
  func.func @transform_1(%arg0: i32) -> (i32, i32) {
    %c0_i32 = arith.constant 0 : i32
    %c0_i32_0 = arith.constant 0 : i32
    return %arg0, %c0_i32 : i32, i32
  }
}

</mosaic_0001>

<llo_original>
// kernel: tpu_custom_call.1
$region0: #{tpu_custom_call.1}
  #allocation0 [shape = 'u32[]', space=smem, size = 0x4, offset = 0x4, fixed_abs, tag = 'smem constant byte address 0x4 - core index']
  #allocation1 [shape = 'u32[72,128]{1,0:T(1,128)}', space=vmem, size = 0x9000, scoped, tag = 'internal scratch']
  %s0 = inlined_call_operand.vmem [shape: f32[128,1], index: 0, kind: input, shape index: {}]
  %s1 = inlined_call_operand.vmem [shape: f32[128,50], index: 1, kind: output, shape index: {}]
  %s2 = sld [smem:[#allocation0]]
  $region14: #{tpu_custom_call.1} parent=0
    _
  %s4 = ssub.s32 1, %s2
  %s5 = scalar_select 0, %s4, %s2
  // Predicated region
  $region2: #{tpu_custom_call.1} parent=0 // pred_check
    _
  $region3: #{tpu_custom_call.1} parent=0 // pred_check_branch
    %7 = sbr.rel (0) target = $region5
  $region4: #{tpu_custom_call.1} parent=0 // pred_region
    _
  $region5: #{tpu_custom_call.1} parent=0 // pred_fallthru
    _
  %v8 = vlaneseq
  %v9 = vand.u32 %v8, 127
  %v10 = vcvt.s32.f32 %v9
  %v11 = vmul.f32 %v10, 0.10204082
  %v12 = vadd.f32 %v11, 0.0
  %v13 = vld [vmem:[%s0] sm:$0xff]
  %v14 = vld [vmem:[%s0 + $0x8] sm:$0xff]
  %v15 = vld [vmem:[%s0 + $0x10] sm:$0xff]
  %v16 = vld [vmem:[%s0 + $0x18] sm:$0xff]
  %v17 = vld [vmem:[%s0 + $0x20] sm:$0xff]
  %v18 = vld [vmem:[%s0 + $0x28] sm:$0xff]
  %v19 = vld [vmem:[%s0 + $0x30] sm:$0xff]
  %v20 = vld [vmem:[%s0 + $0x38] sm:$0xff]
  %v21 = vld [vmem:[%s0 + $0x40] sm:$0xff]
  %v22 = vld [vmem:[%s0 + $0x48] sm:$0xff]
  %v23 = vld [vmem:[%s0 + $0x50] sm:$0xff]
  %v24 = vld [vmem:[%s0 + $0x58] sm:$0xff]
  %v25 = vld [vmem:[%s0 + $0x60] sm:$0xff]
  %v26 = vld [vmem:[%s0 + $0x68] sm:$0xff]
  %v27 = vld [vmem:[%s0 + $0x70] sm:$0xff]
  %v28 = vld [vmem:[%s0 + $0x78] sm:$0xff]
  %30 = vset.pattern.permute.xlu0 0
  %31 = vperm.xlu0 %30, %v13
  %v32 = vpop.permute.xlu0 %31
  %35 = vset.pattern.permute.xlu0 0
  %36 = vperm.xlu0 %35, %v14
  %v37 = vpop.permute.xlu0 %36
  %40 = vset.pattern.permute.xlu0 0
  %41 = vperm.xlu0 %40, %v15
  %v42 = vpop.permute.xlu0 %41
  %45 = vset.pattern.permute.xlu0 0
  %46 = vperm.xlu0 %45, %v16
  %v47 = vpop.permute.xlu0 %46
  %50 = vset.pattern.permute.xlu0 0
  %51 = vperm.xlu0 %50, %v17
  %v52 = vpop.permute.xlu0 %51
  %55 = vset.pattern.permute.xlu0 0
  %56 = vperm.xlu0 %55, %v18
  %v57 = vpop.permute.xlu0 %56
  %60 = vset.pattern.permute.xlu0 0
  %61 = vperm.xlu0 %60, %v19
  %v62 = vpop.permute.xlu0 %61
  %65 = vset.pattern.permute.xlu0 0
  %66 = vperm.xlu0 %65, %v20
  %v67 = vpop.permute.xlu0 %66
  %70 = vset.pattern.permute.xlu0 0
  %71 = vperm.xlu0 %70, %v21
  %v72 = vpop.permute.xlu0 %71
  %75 = vset.pattern.permute.xlu0 0
  %76 = vperm.xlu0 %75, %v22
  %v77 = vpop.permute.xlu0 %76
  %80 = vset.pattern.permute.xlu0 0
  %81 = vperm.xlu0 %80, %v23
  %v82 = vpop.permute.xlu0 %81
  %85 = vset.pattern.permute.xlu0 0
  %86 = vperm.xlu0 %85, %v24
  %v87 = vpop.permute.xlu0 %86
  %90 = vset.pattern.permute.xlu0 0
  %91 = vperm.xlu0 %90, %v25
  %v92 = vpop.permute.xlu0 %91
  %95 = vset.pattern.permute.xlu0 0
  %96 = vperm.xlu0 %95, %v26
  %v97 = vpop.permute.xlu0 %96
  %100 = vset.pattern.permute.xlu0 0
  %101 = vperm.xlu0 %100, %v27
  %v102 = vpop.permute.xlu0 %101
  %105 = vset.pattern.permute.xlu0 0
  %106 = vperm.xlu0 %105, %v28
  %v107 = vpop.permute.xlu0 %106
  %v109 = vsub.f32 %v32, %v12
  %v110 = vsub.f32 %v37, %v12
  %v111 = vsub.f32 %v42, %v12
  %v112 = vsub.f32 %v47, %v12
  %v113 = vsub.f32 %v52, %v12
  %v114 = vsub.f32 %v57, %v12
  %v115 = vsub.f32 %v62, %v12
  %v116 = vsub.f32 %v67, %v12
  %v117 = vsub.f32 %v72, %v12
  %v118 = vsub.f32 %v77, %v12
  %v119 = vsub.f32 %v82, %v12
  %v120 = vsub.f32 %v87, %v12
  %v121 = vsub.f32 %v92, %v12
  %v122 = vsub.f32 %v97, %v12
  %v123 = vsub.f32 %v102, %v12
  %v124 = vsub.f32 %v107, %v12
  %v125 = vmul.f32 %v109, %v109
  %v126 = vmul.f32 %v110, %v110
  %v127 = vmul.f32 %v111, %v111
  %v128 = vmul.f32 %v112, %v112
  %v129 = vmul.f32 %v113, %v113
  %v130 = vmul.f32 %v114, %v114
  %v131 = vmul.f32 %v115, %v115
  %v132 = vmul.f32 %v116, %v116
  %v133 = vmul.f32 %v117, %v117
  %v134 = vmul.f32 %v118, %v118
  %v135 = vmul.f32 %v119, %v119
  %v136 = vmul.f32 %v120, %v120
  %v137 = vmul.f32 %v121, %v121
  %v138 = vmul.f32 %v122, %v122
  %v139 = vmul.f32 %v123, %v123
  %v140 = vmul.f32 %v124, %v124
  %v141 = vmul.f32 %v125, -48.02
  %v142 = vmul.f32 %v126, -48.02
  %v143 = vmul.f32 %v127, -48.02
  %v144 = vmul.f32 %v128, -48.02
  %v145 = vmul.f32 %v129, -48.02
  %v146 = vmul.f32 %v130, -48.02
  %v147 = vmul.f32 %v131, -48.02
  %v148 = vmul.f32 %v132, -48.02
  %v149 = vmul.f32 %v133, -48.02
  %v150 = vmul.f32 %v134, -48.02
  %v151 = vmul.f32 %v135, -48.02
  %v152 = vmul.f32 %v136, -48.02
  %v153 = vmul.f32 %v137, -48.02
  %v154 = vmul.f32 %v138, -48.02
  %v155 = vmul.f32 %v139, -48.02
  %v156 = vmul.f32 %v140, -48.02
  %v157 = vmul.f32 %v141, 1.442695
  %v158 = vpow.pop %v157
  %v159 = vmul.f32 %v142, 1.442695
  %v160 = vpow.pop %v159
  %v161 = vmul.f32 %v143, 1.442695
  %v162 = vpow.pop %v161
  %v163 = vmul.f32 %v144, 1.442695
  %v164 = vpow.pop %v163
  %v165 = vmul.f32 %v145, 1.442695
  %v166 = vpow.pop %v165
  %v167 = vmul.f32 %v146, 1.442695
  %v168 = vpow.pop %v167
  %v169 = vmul.f32 %v147, 1.442695
  %v170 = vpow.pop %v169
  %v171 = vmul.f32 %v148, 1.442695
  %v172 = vpow.pop %v171
  %v173 = vmul.f32 %v149, 1.442695
  %v174 = vpow.pop %v173
  %v175 = vmul.f32 %v150, 1.442695
  %v176 = vpow.pop %v175
  %v177 = vmul.f32 %v151, 1.442695
  %v178 = vpow.pop %v177
  %v179 = vmul.f32 %v152, 1.442695
  %v180 = vpow.pop %v179
  %v181 = vmul.f32 %v153, 1.442695
  %v182 = vpow.pop %v181
  %v183 = vmul.f32 %v154, 1.442695
  %v184 = vpow.pop %v183
  %v185 = vmul.f32 %v155, 1.442695
  %v186 = vpow.pop %v185
  %v187 = vmul.f32 %v156, 1.442695
  %v188 = vpow.pop %v187
  %vm189 = vcmask 408576
  %190 = vst.msk [vmem:[%s1] sm:$0xff] %vm189, %v158
  %191 = vst.msk [vmem:[%s1 + $0x8] sm:$0xff] %vm189, %v160
  %192 = vst.msk [vmem:[%s1 + $0x10] sm:$0xff] %vm189, %v162
  %193 = vst.msk [vmem:[%s1 + $0x18] sm:$0xff] %vm189, %v164
  %194 = vst.msk [vmem:[%s1 + $0x20] sm:$0xff] %vm189, %v166
  %195 = vst.msk [vmem:[%s1 + $0x28] sm:$0xff] %vm189, %v168
  %196 = vst.msk [vmem:[%s1 + $0x30] sm:$0xff] %vm189, %v170
  %197 = vst.msk [vmem:[%s1 + $0x38] sm:$0xff] %vm189, %v172
  %198 = vst.msk [vmem:[%s1 + $0x40] sm:$0xff] %vm189, %v174
  %199 = vst.msk [vmem:[%s1 + $0x48] sm:$0xff] %vm189, %v176
  %200 = vst.msk [vmem:[%s1 + $0x50] sm:$0xff] %vm189, %v178
  %201 = vst.msk [vmem:[%s1 + $0x58] sm:$0xff] %vm189, %v180
  %202 = vst.msk [vmem:[%s1 + $0x60] sm:$0xff] %vm189, %v182
  %203 = vst.msk [vmem:[%s1 + $0x68] sm:$0xff] %vm189, %v184
  %204 = vst.msk [vmem:[%s1 + $0x70] sm:$0xff] %vm189, %v186
  %205 = vst.msk [vmem:[%s1 + $0x78] sm:$0xff] %vm189, %v188
  // Predicated region
  $region6: #{tpu_custom_call.1} parent=0 // pred_check
    _
  $region7: #{tpu_custom_call.1} parent=0 // pred_check_branch
    %207 = sbr.rel (0) target = $region9
  $region8: #{tpu_custom_call.1} parent=0 // pred_region
    _
  $region9: #{tpu_custom_call.1} parent=0 // pred_fallthru
    _
  // Predicated region
  $region10: #{tpu_custom_call.1} parent=0 // pred_check
    _
  $region11: #{tpu_custom_call.1} parent=0 // pred_check_branch
    %209 = sbr.rel (0) target = $region13
  $region12: #{tpu_custom_call.1} parent=0 // pred_region
    _
  $region13: #{tpu_custom_call.1} parent=0 // pred_fallthru
    _

</llo_original>
